<compile_context>
chip_gen: v5e
topology: v5e:2x2
jax: 0.10.0
libtpu: 0.0.40
codegen_flags: <defaults>
</compile_context>

<pallas_src>
import functools

import jax
import jax.numpy as jnp
from jax import lax
from jax.experimental import pallas as pl
from jax.experimental.pallas import tpu as pltpu


def _dropout_kernel(seed_ref, x_ref, o_ref, *, threshold: int, scale: float,
                    block_elems: int):
    shape = x_ref.shape
    # Global element index of every element in this block (counter for the
    # stateless PRNG; independent of the row-tiling choice).
    local = (lax.broadcasted_iota(jnp.int32, shape, 0) * shape[1]
             + lax.broadcasted_iota(jnp.int32, shape, 1))
    gidx = (local + pl.program_id(0) * block_elems).astype(jnp.uint32)

    # Counter-based hash PRNG (murmur3-style finalizer), seed mixed in
    # nonlinearly.  Plain 32-bit VPU integer ops -> portable and cheap.
    seed = seed_ref[0].astype(jnp.uint32)
    h = gidx * jnp.uint32(0x9E3779B9) + seed * jnp.uint32(0x85EBCA6B)
    h = h ^ (h >> 16)
    h = h * jnp.uint32(0x7FEB352D)
    h = h ^ (h >> 15)
    h = h * jnp.uint32(0x846CA68B)
    h = h ^ (h >> 16)

    # drop iff uniform < p  <=>  raw bits < p * 2^32 (integer compare, no
    # int->float conversion).
    drop = h < jnp.uint32(threshold)

    x = x_ref[...]
    kept = x * jnp.asarray(scale, dtype=x.dtype)      # stay in x.dtype
    zero = jnp.zeros((), dtype=x.dtype)
    o_ref[...] = jnp.where(drop, zero, kept).astype(o_ref.dtype)


def pallas_dropout(x, p: float, seed: int = 0, training: bool = True,
                   target_block_bytes: int = 2 << 20):
    assert 0.0 <= p < 1.0, "p is a probability from 0 to 1"
    if (not training) or p == 0.0:
        return x

    orig_shape = x.shape
    n = x.size

    # Pick the widest lane dimension (multiple of 128) that divides n so the
    # output stores are lane-dense and no padding is needed; fall back to 128
    # with a tiny (<128-elem) lane pad otherwise.
    lane_w = 128
    for w in (4096, 2048, 1024, 512, 256, 128):
        if n % w == 0:
            lane_w = w
            break

    xf = x.reshape(-1)
    pad = (-n) % lane_w
    if pad:
        xf = jnp.concatenate([xf, jnp.zeros((pad,), x.dtype)])
    rows = xf.size // lane_w
    x2 = xf.reshape(rows, lane_w)

    # Row tile sized for ~target_block_bytes per block; multiple of 8 unless it
    # covers the full row extent.  Partial last block handled by Pallas masking
    # (grid = cdiv), so no row-padding pass is needed.
    itemsize = jnp.dtype(x.dtype).itemsize
    tr = max(8, (target_block_bytes // (lane_w * itemsize)) // 8 * 8)
    tr = min(rows, tr)
    grid = (pl.cdiv(rows, tr),)

    seed_arr = jnp.array([seed], dtype=jnp.int32)
    threshold = min(int(p * (1 << 32)), (1 << 32) - 1)
    scale = 1.0 / (1.0 - p)

    out2 = pl.pallas_call(
        functools.partial(_dropout_kernel, threshold=threshold, scale=scale,
                          block_elems=tr * lane_w),
        out_shape=jax.ShapeDtypeStruct((rows, lane_w), x.dtype),
        grid_spec=pltpu.PrefetchScalarGridSpec(
            num_scalar_prefetch=1,
            grid=grid,
            in_specs=[pl.BlockSpec((tr, lane_w), lambda i, seed: (i, 0))],
            out_specs=pl.BlockSpec((tr, lane_w), lambda i, seed: (i, 0)),
        ),
        compiler_params=pltpu.CompilerParams(
            # Tiles are fully independent (stateless PRNG) -> let megacore
            # (v7x) shard the grid across TensorCores.
            dimension_semantics=("parallel",)),
    )(seed_arr, x2)

    if pad:
        return out2.reshape(-1)[:n].reshape(orig_shape)
    return out2.reshape(orig_shape)


if __name__ == "__main__":
    key = jax.random.PRNGKey(0)
    x = jax.random.normal(key, (2, 4, 16, 16), dtype=jnp.float32)  # NCHW
    p = 0.3

    # Training-mode dropout through the Pallas kernel.
    y = pallas_dropout(x, p, seed=1234, training=True)
    jax.block_until_ready(y)

    # Eval mode is the identity (no kernel needed).
    y_eval = pallas_dropout(x, p, seed=1234, training=False)
    assert jnp.array_equal(y_eval, x)

    # Every output element must be either 0 (dropped) or x / (1 - p) (kept).
    scaled = x / (1.0 - p)
    ok = jnp.logical_or(jnp.isclose(y, 0.0, atol=1e-6),
                        jnp.isclose(y, scaled, atol=1e-5, rtol=1e-5))
    assert bool(jnp.all(ok)), "dropout output values inconsistent"

    # Empirical drop rate should be roughly p.
    drop_frac = float(jnp.mean((y == 0.0) & (x != 0.0)))
    assert abs(drop_frac - p) < 0.1, f"drop fraction {drop_frac} far from p={p}"

    print("KERNEL_OK")
</pallas_src>

<mosaic_0001>
module attributes {stable_mosaic.version = 11 : i64} {
  func.func @_dropout_kernel(%arg0: i32, %arg1: memref<1xi32, #tpu.memory_space<smem>>, %arg2: memref<1x2048xf32, #tpu.memory_space<vmem>>, %arg3: memref<1x2048xf32, #tpu.memory_space<vmem>>) attributes {dimension_semantics = [#tpu.dimension_semantics<parallel>], iteration_bounds = array<i64: 1>, scalar_prefetch = 1 : i64, scratch_operands = 0 : i64, tpu.core_type = #tpu.core_type<tc>, window_params = [{transform_indices = @transform_0, window_bounds = array<i64: 1, 2048>}, {transform_indices = @transform_1, window_bounds = array<i64: 1, 2048>}]} {
    %0 = tpu.iota {dimensions = array<i32: 0>} : vector<1x2048xi32>
    %c2048_i32 = arith.constant 2048 : i32
    %1 = vector.broadcast %c2048_i32 : i32 to vector<1x2048xi32>
    %2 = arith.muli %0, %1 : vector<1x2048xi32>
    %3 = tpu.iota {dimensions = array<i32: 1>} : vector<1x2048xi32>
    %4 = arith.addi %2, %3 : vector<1x2048xi32>
    %c2048_i32_0 = arith.constant 2048 : i32
    %5 = arith.muli %arg0, %c2048_i32_0 : i32
    %6 = vector.broadcast %5 : i32 to vector<1x2048xi32>
    %7 = arith.addi %4, %6 : vector<1x2048xi32>
    %c0 = arith.constant 0 : index
    %8 = memref.load %arg1[%c0] : memref<1xi32, #tpu.memory_space<smem>>
    %c-1640531527_i32 = arith.constant -1640531527 : i32
    %9 = vector.broadcast %c-1640531527_i32 : i32 to vector<1x2048xi32>
    %10 = arith.muli %7, %9 : vector<1x2048xi32>
    %c-2048144789_i32 = arith.constant -2048144789 : i32
    %11 = arith.muli %8, %c-2048144789_i32 : i32
    %12 = vector.broadcast %11 : i32 to vector<1x2048xi32>
    %13 = arith.addi %10, %12 : vector<1x2048xi32>
    %c16_i32 = arith.constant 16 : i32
    %14 = vector.broadcast %c16_i32 : i32 to vector<1x2048xi32>
    %15 = arith.shrui %13, %14 : vector<1x2048xi32>
    %16 = arith.xori %13, %15 : vector<1x2048xi32>
    %c2146121005_i32 = arith.constant 2146121005 : i32
    %17 = vector.broadcast %c2146121005_i32 : i32 to vector<1x2048xi32>
    %18 = arith.muli %16, %17 : vector<1x2048xi32>
    %c15_i32 = arith.constant 15 : i32
    %19 = vector.broadcast %c15_i32 : i32 to vector<1x2048xi32>
    %20 = arith.shrui %18, %19 : vector<1x2048xi32>
    %21 = arith.xori %18, %20 : vector<1x2048xi32>
    %c-2073254261_i32 = arith.constant -2073254261 : i32
    %22 = vector.broadcast %c-2073254261_i32 : i32 to vector<1x2048xi32>
    %23 = arith.muli %21, %22 : vector<1x2048xi32>
    %c16_i32_1 = arith.constant 16 : i32
    %24 = vector.broadcast %c16_i32_1 : i32 to vector<1x2048xi32>
    %25 = arith.shrui %23, %24 : vector<1x2048xi32>
    %26 = arith.xori %23, %25 : vector<1x2048xi32>
    %c1288490188_i32 = arith.constant 1288490188 : i32
    %27 = vector.broadcast %c1288490188_i32 : i32 to vector<1x2048xi32>
    %28 = arith.cmpi ult, %26, %27 : vector<1x2048xi32>
    %c0_2 = arith.constant 0 : index
    %c0_3 = arith.constant 0 : index
    %29 = vector.load %arg2[%c0_2, %c0_3] : memref<1x2048xf32, #tpu.memory_space<vmem>>, vector<1x2048xf32>
    %cst = arith.constant 1.42857146 : f32
    %30 = vector.broadcast %cst : f32 to vector<1x2048xf32>
    %31 = arith.mulf %29, %30 : vector<1x2048xf32>
    %cst_4 = arith.constant 0.000000e+00 : f32
    %32 = vector.broadcast %cst_4 : f32 to vector<1x2048xf32>
    %33 = arith.select %28, %32, %31 : vector<1x2048xi1>, vector<1x2048xf32>
    %c0_5 = arith.constant 0 : index
    %c0_6 = arith.constant 0 : index
    %34 = vector.load %arg3[%c0_5, %c0_6] : memref<1x2048xf32, #tpu.memory_space<vmem>>, vector<1x2048xf32>
    tpu.vector_store %arg3[%c0_5, %c0_6], %33 {strides = array<i32>} : memref<1x2048xf32, #tpu.memory_space<vmem>>, vector<1x2048xf32>,
    return
  }
  func.func @transform_0(%arg0: i32, %arg1: memref<1xi32, #tpu.memory_space<smem>>) -> (i32, i32) {
    %c0_i32 = arith.constant 0 : i32
    %c0_i32_0 = arith.constant 0 : i32
    return %arg0, %c0_i32 : i32, i32
  }
  func.func @transform_1(%arg0: i32, %arg1: memref<1xi32, #tpu.memory_space<smem>>) -> (i32, i32) {
    %c0_i32 = arith.constant 0 : i32
    %c0_i32_0 = arith.constant 0 : i32
    return %arg0, %c0_i32 : i32, i32
  }
}

</mosaic_0001>

<llo_original>
// kernel: tpu_custom_call.1
$region0: #{tpu_custom_call.1}
  #allocation0 [shape = 'u32[]', space=smem, size = 0x4, offset = 0x4, fixed_abs, tag = 'smem constant byte address 0x4 - core index']
  #allocation1 [shape = 'u32[72,128]{1,0:T(1,128)}', space=vmem, size = 0x9000, scoped, tag = 'internal scratch']
  #allocation2 [shape = 's32[1]{0}', space=sflag, size = 0x4, scoped, tag = 'scoped memory for tpu_custom_call.1']
  #allocation3 [shape = 's32[1]{0:T(128)S(6)}', space=smem, size = 0x200, scoped, tag = 'prefetched SMEM operand 0']
  %s0 = inlined_call_operand.<no memory space> [shape: s32[1], index: 0, kind: input, shape index: {}]
  %s1 = inlined_call_operand.hbm [shape: f32[1,2048], index: 1, kind: input, shape index: {}]
  %s2 = inlined_call_operand.hbm [shape: f32[1,2048], index: 2, kind: output, shape index: {}]
  %s3 = sld [smem:[#allocation0]]
  $region18: #{tpu_custom_call.1} parent=0
    _
  %s5 = ssub.s32 1, %s3
  %s6 = scalar_select 0, %s5, %s3
  %7 = sst [smem:[#allocation3]] %s0
  $region1: #{tpu_custom_call.1} parent=0
    #allocation4 [shape = 'u8[8192]{0}', space=vmem, size = 0x2000, scoped, tag = 'input window, operand 1, single buffered']
    #allocation5 [shape = 's32[1]{0}', space=sflag, size = 0x4, scoped, tag = 'scoped memory for tpu_custom_call.1']
    #allocation6 [shape = 's32[1]{0}', space=sflag, size = 0x4, scoped, tag = 'scoped memory for tpu_custom_call.1']
    #allocation7 [shape = 'u8[8192]{0}', space=vmem, size = 0x2000, scoped, tag = 'output window, operand 0, single buffered']
    %8 = vsyncpa [#allocation5], 0
    %9 = vsyncpa [#allocation6], 0
    // Predicated region
    $region2: #{tpu_custom_call.1} parent=1 // pred_check
      _
    $region3: #{tpu_custom_call.1} parent=1 // pred_check_branch
      %11 = sbr.rel (0) target = $region5
    $region4: #{tpu_custom_call.1} parent=1 // pred_region
      %13 = vsyncadd [#allocation5], 0
      %s15 = sshll.u32 %s1, 4
      %s16 = int_to_ptr.hbm [resolvable:$true] %s15
      %s17 = sshll.u32 [#allocation4], 4
      %s18 = int_to_ptr.vmem [resolvable:$true] %s17
      %20 = dma.hbm_to_vmem [thread:$0]  %s16, 256, %s18, [#allocation5]
    $region5: #{tpu_custom_call.1} parent=1 // pred_fallthru
      _
    // Predicated region
    $region6: #{tpu_custom_call.1} parent=1 // pred_check
      _
    $region7: #{tpu_custom_call.1} parent=1 // pred_check_branch
      %22 = sbr.rel (0) target = $region9
    $region8: #{tpu_custom_call.1} parent=1 // pred_region
      %24 = dma.done [#allocation5], 256
    $region9: #{tpu_custom_call.1} parent=1 // pred_fallthru
      _
    %v25 = vlaneseq
    %v26 = vshrl.u32 %v25, 7
    %v27 = vmul.u32 %v26, 2048
    %v28 = vlaneseq
    %v29 = vand.u32 %v28, 127
    %v30 = vadd.s32 %v29, 128
    %v31 = vadd.s32 %v29, 256
    %v32 = vadd.s32 %v29, 384
    %v33 = vadd.s32 %v29, 512
    %v34 = vadd.s32 %v29, 640
    %v35 = vadd.s32 %v29, 768
    %v36 = vadd.s32 %v29, 896
    %v37 = vadd.s32 %v29, 1024
    %v38 = vadd.s32 %v29, 1152
    %v39 = vadd.s32 %v29, 1280
    %v40 = vadd.s32 %v29, 1408
    %v41 = vadd.s32 %v29, 1536
    %v42 = vadd.s32 %v29, 1664
    %v43 = vadd.s32 %v29, 1792
    %v44 = vadd.s32 %v29, 1920
    %v45 = vadd.s32 %v27, %v29
    %v46 = vadd.s32 %v27, %v30
    %v47 = vadd.s32 %v27, %v31
    %v48 = vadd.s32 %v27, %v32
    %v49 = vadd.s32 %v27, %v33
    %v50 = vadd.s32 %v27, %v34
    %v51 = vadd.s32 %v27, %v35
    %v52 = vadd.s32 %v27, %v36
    %v53 = vadd.s32 %v27, %v37
    %v54 = vadd.s32 %v27, %v38
    %v55 = vadd.s32 %v27, %v39
    %v56 = vadd.s32 %v27, %v40
    %v57 = vadd.s32 %v27, %v41
    %v58 = vadd.s32 %v27, %v42
    %v59 = vadd.s32 %v27, %v43
    %v60 = vadd.s32 %v27, %v44
    %s61 = smul.u32 0, 2048
    %v62 = vstv %s61
    %v63 = vadd.s32 %v45, %v62
    %v64 = vadd.s32 %v46, %v62
    %v65 = vadd.s32 %v47, %v62
    %v66 = vadd.s32 %v48, %v62
    %v67 = vadd.s32 %v49, %v62
    %v68 = vadd.s32 %v50, %v62
    %v69 = vadd.s32 %v51, %v62
    %v70 = vadd.s32 %v52, %v62
    %v71 = vadd.s32 %v53, %v62
    %v72 = vadd.s32 %v54, %v62
    %v73 = vadd.s32 %v55, %v62
    %v74 = vadd.s32 %v56, %v62
    %v75 = vadd.s32 %v57, %v62
    %v76 = vadd.s32 %v58, %v62
    %v77 = vadd.s32 %v59, %v62
    %v78 = vadd.s32 %v60, %v62
    %s79 = sld [smem:[#allocation3]]
    %v80 = vmul.u32 %v63, 2654435769
    %v81 = vmul.u32 %v64, 2654435769
    %v82 = vmul.u32 %v65, 2654435769
    %v83 = vmul.u32 %v66, 2654435769
    %v84 = vmul.u32 %v67, 2654435769
    %v85 = vmul.u32 %v68, 2654435769
    %v86 = vmul.u32 %v69, 2654435769
    %v87 = vmul.u32 %v70, 2654435769
    %v88 = vmul.u32 %v71, 2654435769
    %v89 = vmul.u32 %v72, 2654435769
    %v90 = vmul.u32 %v73, 2654435769
    %v91 = vmul.u32 %v74, 2654435769
    %v92 = vmul.u32 %v75, 2654435769
    %v93 = vmul.u32 %v76, 2654435769
    %v94 = vmul.u32 %v77, 2654435769
    %v95 = vmul.u32 %v78, 2654435769
    %s96 = smul.u32 %s79, 2246822507
    %v97 = vstv %s96
    %v98 = vadd.s32 %v80, %v97
    %v99 = vadd.s32 %v81, %v97
    %v100 = vadd.s32 %v82, %v97
    %v101 = vadd.s32 %v83, %v97
    %v102 = vadd.s32 %v84, %v97
    %v103 = vadd.s32 %v85, %v97
    %v104 = vadd.s32 %v86, %v97
    %v105 = vadd.s32 %v87, %v97
    %v106 = vadd.s32 %v88, %v97
    %v107 = vadd.s32 %v89, %v97
    %v108 = vadd.s32 %v90, %v97
    %v109 = vadd.s32 %v91, %v97
    %v110 = vadd.s32 %v92, %v97
    %v111 = vadd.s32 %v93, %v97
    %v112 = vadd.s32 %v94, %v97
    %v113 = vadd.s32 %v95, %v97
    %v114 = vshrl.u32 %v98, 16
    %v115 = vshrl.u32 %v99, 16
    %v116 = vshrl.u32 %v100, 16
    %v117 = vshrl.u32 %v101, 16
    %v118 = vshrl.u32 %v102, 16
    %v119 = vshrl.u32 %v103, 16
    %v120 = vshrl.u32 %v104, 16
    %v121 = vshrl.u32 %v105, 16
    %v122 = vshrl.u32 %v106, 16
    %v123 = vshrl.u32 %v107, 16
    %v124 = vshrl.u32 %v108, 16
    %v125 = vshrl.u32 %v109, 16
    %v126 = vshrl.u32 %v110, 16
    %v127 = vshrl.u32 %v111, 16
    %v128 = vshrl.u32 %v112, 16
    %v129 = vshrl.u32 %v113, 16
    %v130 = vxor.u32 %v98, %v114
    %v131 = vxor.u32 %v99, %v115
    %v132 = vxor.u32 %v100, %v116
    %v133 = vxor.u32 %v101, %v117
    %v134 = vxor.u32 %v102, %v118
    %v135 = vxor.u32 %v103, %v119
    %v136 = vxor.u32 %v104, %v120
    %v137 = vxor.u32 %v105, %v121
    %v138 = vxor.u32 %v106, %v122
    %v139 = vxor.u32 %v107, %v123
    %v140 = vxor.u32 %v108, %v124
    %v141 = vxor.u32 %v109, %v125
    %v142 = vxor.u32 %v110, %v126
    %v143 = vxor.u32 %v111, %v127
    %v144 = vxor.u32 %v112, %v128
    %v145 = vxor.u32 %v113, %v129
    %v146 = vmul.u32 %v130, 2146121005
    %v147 = vmul.u32 %v131, 2146121005
    %v148 = vmul.u32 %v132, 2146121005
    %v149 = vmul.u32 %v133, 2146121005
    %v150 = vmul.u32 %v134, 2146121005
    %v151 = vmul.u32 %v135, 2146121005
    %v152 = vmul.u32 %v136, 2146121005
    %v153 = vmul.u32 %v137, 2146121005
    %v154 = vmul.u32 %v138, 2146121005
    %v155 = vmul.u32 %v139, 2146121005
    %v156 = vmul.u32 %v140, 2146121005
    %v157 = vmul.u32 %v141, 2146121005
    %v158 = vmul.u32 %v142, 2146121005
    %v159 = vmul.u32 %v143, 2146121005
    %v160 = vmul.u32 %v144, 2146121005
    %v161 = vmul.u32 %v145, 2146121005
    %v162 = vshrl.u32 %v146, 15
    %v163 = vshrl.u32 %v147, 15
    %v164 = vshrl.u32 %v148, 15
    %v165 = vshrl.u32 %v149, 15
    %v166 = vshrl.u32 %v150, 15
    %v167 = vshrl.u32 %v151, 15
    %v168 = vshrl.u32 %v152, 15
    %v169 = vshrl.u32 %v153, 15
    %v170 = vshrl.u32 %v154, 15
    %v171 = vshrl.u32 %v155, 15
    %v172 = vshrl.u32 %v156, 15
    %v173 = vshrl.u32 %v157, 15
    %v174 = vshrl.u32 %v158, 15
    %v175 = vshrl.u32 %v159, 15
    %v176 = vshrl.u32 %v160, 15
    %v177 = vshrl.u32 %v161, 15
    %v178 = vxor.u32 %v146, %v162
    %v179 = vxor.u32 %v147, %v163
    %v180 = vxor.u32 %v148, %v164
    %v181 = vxor.u32 %v149, %v165
    %v182 = vxor.u32 %v150, %v166
    %v183 = vxor.u32 %v151, %v167
    %v184 = vxor.u32 %v152, %v168
    %v185 = vxor.u32 %v153, %v169
    %v186 = vxor.u32 %v154, %v170
    %v187 = vxor.u32 %v155, %v171
    %v188 = vxor.u32 %v156, %v172
    %v189 = vxor.u32 %v157, %v173
    %v190 = vxor.u32 %v158, %v174
    %v191 = vxor.u32 %v159, %v175
    %v192 = vxor.u32 %v160, %v176
    %v193 = vxor.u32 %v161, %v177
    %v194 = vmul.u32 %v178, 2221713035
    %v195 = vmul.u32 %v179, 2221713035
    %v196 = vmul.u32 %v180, 2221713035
    %v197 = vmul.u32 %v181, 2221713035
    %v198 = vmul.u32 %v182, 2221713035
    %v199 = vmul.u32 %v183, 2221713035
    %v200 = vmul.u32 %v184, 2221713035
    %v201 = vmul.u32 %v185, 2221713035
    %v202 = vmul.u32 %v186, 2221713035
    %v203 = vmul.u32 %v187, 2221713035
    %v204 = vmul.u32 %v188, 2221713035
    %v205 = vmul.u32 %v189, 2221713035
    %v206 = vmul.u32 %v190, 2221713035
    %v207 = vmul.u32 %v191, 2221713035
    %v208 = vmul.u32 %v192, 2221713035
    %v209 = vmul.u32 %v193, 2221713035
    %v210 = vshrl.u32 %v194, 16
    %v211 = vshrl.u32 %v195, 16
    %v212 = vshrl.u32 %v196, 16
    %v213 = vshrl.u32 %v197, 16
    %v214 = vshrl.u32 %v198, 16
    %v215 = vshrl.u32 %v199, 16
    %v216 = vshrl.u32 %v200, 16
    %v217 = vshrl.u32 %v201, 16
    %v218 = vshrl.u32 %v202, 16
    %v219 = vshrl.u32 %v203, 16
    %v220 = vshrl.u32 %v204, 16
    %v221 = vshrl.u32 %v205, 16
    %v222 = vshrl.u32 %v206, 16
    %v223 = vshrl.u32 %v207, 16
    %v224 = vshrl.u32 %v208, 16
    %v225 = vshrl.u32 %v209, 16
    %v226 = vxor.u32 %v194, %v210
    %v227 = vxor.u32 %v195, %v211
    %v228 = vxor.u32 %v196, %v212
    %v229 = vxor.u32 %v197, %v213
    %v230 = vxor.u32 %v198, %v214
    %v231 = vxor.u32 %v199, %v215
    %v232 = vxor.u32 %v200, %v216
    %v233 = vxor.u32 %v201, %v217
    %v234 = vxor.u32 %v202, %v218
    %v235 = vxor.u32 %v203, %v219
    %v236 = vxor.u32 %v204, %v220
    %v237 = vxor.u32 %v205, %v221
    %v238 = vxor.u32 %v206, %v222
    %v239 = vxor.u32 %v207, %v223
    %v240 = vxor.u32 %v208, %v224
    %v241 = vxor.u32 %v209, %v225
    %v242 = vadd.s32 %v226, 2147483648
    %vm244 = vcmp.lt.s32.totalorder %v242, 3435973836
    %v245 = vadd.s32 %v227, 2147483648
    %vm247 = vcmp.lt.s32.totalorder %v245, 3435973836
    %v248 = vadd.s32 %v228, 2147483648
    %vm250 = vcmp.lt.s32.totalorder %v248, 3435973836
    %v251 = vadd.s32 %v229, 2147483648
    %vm253 = vcmp.lt.s32.totalorder %v251, 3435973836
    %v254 = vadd.s32 %v230, 2147483648
    %vm256 = vcmp.lt.s32.totalorder %v254, 3435973836
    %v257 = vadd.s32 %v231, 2147483648
    %vm259 = vcmp.lt.s32.totalorder %v257, 3435973836
    %v260 = vadd.s32 %v232, 2147483648
    %vm262 = vcmp.lt.s32.totalorder %v260, 3435973836
    %v263 = vadd.s32 %v233, 2147483648
    %vm265 = vcmp.lt.s32.totalorder %v263, 3435973836
    %v266 = vadd.s32 %v234, 2147483648
    %vm268 = vcmp.lt.s32.totalorder %v266, 3435973836
    %v269 = vadd.s32 %v235, 2147483648
    %vm271 = vcmp.lt.s32.totalorder %v269, 3435973836
    %v272 = vadd.s32 %v236, 2147483648
    %vm274 = vcmp.lt.s32.totalorder %v272, 3435973836
    %v275 = vadd.s32 %v237, 2147483648
    %vm277 = vcmp.lt.s32.totalorder %v275, 3435973836
    %v278 = vadd.s32 %v238, 2147483648
    %vm280 = vcmp.lt.s32.totalorder %v278, 3435973836
    %v281 = vadd.s32 %v239, 2147483648
    %vm283 = vcmp.lt.s32.totalorder %v281, 3435973836
    %v284 = vadd.s32 %v240, 2147483648
    %vm286 = vcmp.lt.s32.totalorder %v284, 3435973836
    %v287 = vadd.s32 %v241, 2147483648
    %vm289 = vcmp.lt.s32.totalorder %v287, 3435973836
    %v290 = vld [vmem:[#allocation4] sm:$0xff]
    %v291 = vld [vmem:[#allocation4 + $0x8] sm:$0xff]
    %v292 = vmul.f32 %v290, 1.4285715
    %v293 = vmul.f32 %v291, 1.4285715
    %v296 = vperm.slane %v292, 0
    %v297 = vperm.slane %v292, 1
    %v298 = vperm.slane %v292, 2
    %v299 = vperm.slane %v292, 3
    %v300 = vperm.slane %v292, 4
    %v301 = vperm.slane %v292, 5
    %v302 = vperm.slane %v292, 6
    %v303 = vperm.slane %v292, 7
    %v304 = vperm.slane %v293, 0
    %v305 = vperm.slane %v293, 1
    %v306 = vperm.slane %v293, 2
    %v307 = vperm.slane %v293, 3
    %v308 = vperm.slane %v293, 4
    %v309 = vperm.slane %v293, 5
    %v310 = vperm.slane %v293, 6
    %v311 = vperm.slane %v293, 7
    %v328 = vsel %vm244, 0.0, %v296
    %v329 = vsel %vm247, 0.0, %v297
    %v330 = vsel %vm250, 0.0, %v298
    %v331 = vsel %vm253, 0.0, %v299
    %v332 = vsel %vm256, 0.0, %v300
    %v333 = vsel %vm259, 0.0, %v301
    %v334 = vsel %vm262, 0.0, %v302
    %v335 = vsel %vm265, 0.0, %v303
    %v336 = vsel %vm268, 0.0, %v304
    %v337 = vsel %vm271, 0.0, %v305
    %v338 = vsel %vm274, 0.0, %v306
    %v339 = vsel %vm277, 0.0, %v307
    %v340 = vsel %vm280, 0.0, %v308
    %v341 = vsel %vm283, 0.0, %v309
    %v342 = vsel %vm286, 0.0, %v310
    %v343 = vsel %vm289, 0.0, %v311
    %v360 = vrot.slane %v329, 7
    %v361 = vrot.slane %v330, 6
    %v362 = vrot.slane %v331, 5
    %v363 = vrot.slane %v332, 4
    %v364 = vrot.slane %v333, 3
    %v365 = vrot.slane %v334, 2
    %v366 = vrot.slane %v335, 1
    %v367 = vrot.slane %v337, 7
    %v368 = vrot.slane %v338, 6
    %v369 = vrot.slane %v339, 5
    %v370 = vrot.slane %v340, 4
    %v371 = vrot.slane %v341, 3
    %v372 = vrot.slane %v342, 2
    %v373 = vrot.slane %v343, 1
    %vm374 = vcmask 1040384
    %v375 = vsel %vm374, %v328, %v360
    %vm376 = vcmask 1042434
    %v377 = vsel %vm376, %v361, %v362
    %vm378 = vcmask 1041408
    %v379 = vsel %vm378, %v375, %v377
    %vm380 = vcmask 1044484
    %v381 = vsel %vm380, %v363, %v364
    %vm382 = vcmask 1046534
    %v383 = vsel %vm382, %v365, %v366
    %vm384 = vcmask 1045508
    %v385 = vsel %vm384, %v381, %v383
    %vm386 = vcmask 1043456
    %v387 = vsel %vm386, %v379, %v385
    %v388 = vsel %vm374, %v336, %v367
    %v389 = vsel %vm376, %v368, %v369
    %v390 = vsel %vm378, %v388, %v389
    %v391 = vsel %vm380, %v370, %v371
    %v392 = vsel %vm382, %v372, %v373
    %v393 = vsel %vm384, %v391, %v392
    %v394 = vsel %vm386, %v390, %v393
    %397 = vst [vmem:[#allocation7] sm:$0xff] %v387
    %398 = vst [vmem:[#allocation7 + $0x8] sm:$0xff] %v394
    // Predicated region
    $region10: #{tpu_custom_call.1} parent=1 // pred_check
      _
    $region11: #{tpu_custom_call.1} parent=1 // pred_check_branch
      %400 = sbr.rel (0) target = $region13
    $region12: #{tpu_custom_call.1} parent=1 // pred_region
      %402 = vsyncadd [#allocation6], 0
      %s404 = sshll.u32 [#allocation7], 4
      %s405 = int_to_ptr.vmem [resolvable:$true] %s404
      %s406 = sshll.u32 %s2, 4
      %s407 = int_to_ptr.hbm [resolvable:$true] %s406
      %409 = dma.vmem_to_hbm [thread:$0]  %s405, 256, %s407, [#allocation6]
    $region13: #{tpu_custom_call.1} parent=1 // pred_fallthru
      _
    // Predicated region
    $region14: #{tpu_custom_call.1} parent=1 // pred_check
      _
    $region15: #{tpu_custom_call.1} parent=1 // pred_check_branch
      %411 = sbr.rel (0) target = $region17
    $region16: #{tpu_custom_call.1} parent=1 // pred_region
      %413 = dma.done [#allocation6], 256
    $region17: #{tpu_custom_call.1} parent=1 // pred_fallthru
      _
    %414 = vsyncpa [#allocation5], 1
    %415 = vsyncpa [#allocation6], 1

</llo_original>
